<compile_context>
chip_gen: v5e
topology: v5e:2x2
jax: 0.10.0
libtpu: 0.0.40
codegen_flags: <defaults>
</compile_context>

<pallas_src>
import jax
import jax.numpy as jnp
from jax.experimental import pallas as pl
from jax.experimental.pallas import tpu as pltpu


def _cdiv(a, b):
    return -(-a // b)


def make_dice_loss(n_class, no_bg=False, softmax=False, eps=1e-7,
                   max_tile_rows=256, n_split=2):
    """Dice loss over integer label volumes, backed by a Pallas TPU kernel.

    max_tile_rows: sublane rows (of 128 lanes) per grid step, multiple of 8.
                   256 -> 32768 elements per batch row per block (~256 KiB/input
                   block at B=2), well past the step-overhead regime.
    n_split:       leading 'parallel' grid axis (2 feeds both v7x cores).
    """
    if softmax:
        # TODO(synk): softmax=True path not implemented — with a single input
        # channel (required by this module's one-hot conversion) softmax over
        # dim=1 degenerates; only the default softmax=False semantics are kept.
        raise NotImplementedError("softmax=True is not supported")
    if n_class is None:
        # TODO(synk): dynamic n_class inference (data max) is host-side glue in
        # the PyTorch module; a static class count is required here.
        raise ValueError("n_class must be given statically")
    assert max_tile_rows % 8 == 0 and max_tile_rows >= 8
    assert n_split >= 1

    n_eff = n_class - (1 if no_bg else 0)
    SUB, LANE = 8, 128
    UNIT = SUB * LANE  # elements per (8,128) vreg group

    def kernel(src_ref, tgt_ref, inter_ref, svol_ref, tvol_ref):
        t = pl.program_id(1)

        @pl.when(t == 0)
        def _init():
            inter_ref[...] = jnp.zeros_like(inter_ref)
            svol_ref[...] = jnp.zeros_like(svol_ref)
            tvol_ref[...] = jnp.zeros_like(tvol_ref)

        src = src_ref[...]          # (B, TG, 8, 128) int32 labels
        tgt = tgt_ref[...]
        eq = src == tgt

        # Mask-based per-class accumulation: no materialized one-hot tensors,
        # no per-tile cross-lane (XLU) reductions — only VPU compares and
        # vreg-wise adds over the group axis.
        for c in range(n_class):
            s_c = src == c
            t_c = tgt == c
            i_c = jnp.logical_and(eq, s_c)
            s_p = jnp.sum(s_c.astype(jnp.int32), axis=1)   # (B, 8, 128)
            t_p = jnp.sum(t_c.astype(jnp.int32), axis=1)
            i_p = jnp.sum(i_c.astype(jnp.int32), axis=1)
            r = c * SUB
            svol_ref[:, r:r + SUB, :] += s_p
            tvol_ref[:, r:r + SUB, :] += t_p
            inter_ref[:, r:r + SUB, :] += i_p

    def dice_loss(source, target):
        assert source.shape[0] == target.shape[0]
        B = source.shape[0]
        # TODO(synk): labels could be carried as int8 to cut HBM traffic 4x
        # (biggest win on v5e); kept int32 here for layout simplicity.
        src = source.reshape(B, -1).astype(jnp.int32)   # (B, N)
        tgt = target.reshape(B, -1).astype(jnp.int32)
        N = src.shape[1]
        assert tgt.shape[1] == N

        # ---- lane-dense, (8,128)-aligned tiling with padding ---------------
        groups = _cdiv(N, UNIT)                        # number of (8,128) groups
        groups_per_split = _cdiv(groups, n_split)
        tg = min(max_tile_rows // SUB, groups_per_split)   # groups per tile
        tiles_per_split = _cdiv(groups_per_split, tg)
        groups_pad = n_split * tiles_per_split * tg
        n_pad = groups_pad * UNIT

        if n_pad != N:
            # Fill value n_class matches no real class -> contributes nothing.
            pad = ((0, 0), (0, n_pad - N))
            src = jnp.pad(src, pad, constant_values=n_class)
            tgt = jnp.pad(tgt, pad, constant_values=n_class)

        src4 = src.reshape(B, groups_pad, SUB, LANE)
        tgt4 = tgt.reshape(B, groups_pad, SUB, LANE)

        acc_shape = jax.ShapeDtypeStruct(
            (n_split, B, n_class * SUB, LANE), jnp.int32)
        acc_spec = pl.BlockSpec((None, B, n_class * SUB, LANE),
                                lambda p, t: (p, 0, 0, 0))
        in_spec = pl.BlockSpec((B, tg, SUB, LANE),
                               lambda p, t: (0, p * tiles_per_split + t, 0, 0))

        inter, svol, tvol = pl.pallas_call(
            kernel,
            out_shape=(acc_shape, acc_shape, acc_shape),
            grid_spec=pltpu.PrefetchScalarGridSpec(
                num_scalar_prefetch=0,
                grid=(n_split, tiles_per_split),
                in_specs=[in_spec, in_spec],
                out_specs=(acc_spec, acc_spec, acc_spec),
            ),
            compiler_params=pltpu.CompilerParams(
                dimension_semantics=("parallel", "arbitrary")),
        )(src4, tgt4)

        # Tiny final reduction + score formula in the wrapper (a few KB).
        def total(x):   # (n_split, B, C*8, 128) int32 -> (B, C) f32
            x = x.reshape(n_split, B, n_class, SUB, LANE)
            return x.sum(axis=(0, 3, 4)).astype(jnp.float32)

        inter_t = total(inter)
        svol_t = total(svol)
        tvol_t = total(tvol)
        if no_bg:
            inter_t = inter_t[:, 1:]
            svol_t = svol_t[:, 1:]
            tvol_t = tvol_t[:, 1:]
        scores = (2.0 * inter_t + eps) / (svol_t + tvol_t + 2.0 * eps)
        return -jnp.sum(scores) / float(n_eff)

    return dice_loss


def ref_dice(source, target, n_class, no_bg=False, eps=1e-7):
    """Pure-JAX reference mirroring the PyTorch forward (softmax=False)."""
    B = source.shape[0]
    src = source.reshape(B, -1).astype(jnp.int32)
    tgt = target.reshape(B, -1).astype(jnp.int32)
    s_oh = jax.nn.one_hot(src, n_class, axis=1, dtype=jnp.float32)  # (B, C, N)
    t_oh = jax.nn.one_hot(tgt, n_class, axis=1, dtype=jnp.float32)
    if no_bg:
        s_oh = s_oh[:, 1:, :]
        t_oh = t_oh[:, 1:, :]
    sv = s_oh.sum(2)
    tv = t_oh.sum(2)
    inter = (s_oh * t_oh).sum(2)
    scores = (2.0 * inter + eps) / (sv + tv + 2.0 * eps)
    return -scores.sum() / scores.shape[1]


if __name__ == "__main__":
    key = jax.random.PRNGKey(0)
    B, n_class, D, H, W = 2, 4, 16, 16, 16   # N = D*H*W = 4096
    k1, k2 = jax.random.split(key)
    # Integer label maps in [0, n_class), shaped like the PyTorch Bx1xDxHxW.
    source = jax.random.randint(k1, (B, 1, D, H, W), 0, n_class, dtype=jnp.int32)
    target = jax.random.randint(k2, (B, 1, D, H, W), 0, n_class, dtype=jnp.int32)

    dice = jax.jit(make_dice_loss(n_class=n_class, no_bg=False, eps=1e-7))
    loss = dice(source, target)
    jax.block_until_ready(loss)

    ref = ref_dice(source, target, n_class)
    assert abs(float(loss) - float(ref)) < 1e-5, (float(loss), float(ref))
    print("KERNEL_OK")
</pallas_src>

<mosaic_0001>
module attributes {stable_mosaic.version = 11 : i64} {
  func.func @kernel(%arg0: i32, %arg1: i32, %arg2: memref<2x2x8x128xi32, #tpu.memory_space<vmem>>, %arg3: memref<2x2x8x128xi32, #tpu.memory_space<vmem>>, %arg4: memref<1x2x32x128xi32, #tpu.memory_space<vmem>>, %arg5: memref<1x2x32x128xi32, #tpu.memory_space<vmem>>, %arg6: memref<1x2x32x128xi32, #tpu.memory_space<vmem>>) attributes {dimension_semantics = [#tpu.dimension_semantics<parallel>, #tpu.dimension_semantics<arbitrary>], iteration_bounds = array<i64: 2, 1>, scalar_prefetch = 0 : i64, scratch_operands = 0 : i64, tpu.core_type = #tpu.core_type<tc>, window_params = [{transform_indices = @transform_0, window_bounds = array<i64: 2, 2, 8, 128>}, {transform_indices = @transform_1, window_bounds = array<i64: 2, 2, 8, 128>}, {transform_indices = @transform_2, window_bounds = array<i64: 1, 2, 32, 128>}, {transform_indices = @transform_3, window_bounds = array<i64: 1, 2, 32, 128>}, {transform_indices = @transform_4, window_bounds = array<i64: 1, 2, 32, 128>}]} {
    %c0_i32 = arith.constant 0 : i32
    %0 = arith.cmpi eq, %arg1, %c0_i32 : i32
    %1 = arith.extui %0 : i1 to i32
    %c0_i32_0 = arith.constant 0 : i32
    %2 = arith.cmpi ne, %1, %c0_i32_0 : i32
    scf.if %2 {
      %c0_i32_117 = arith.constant 0 : i32
      %122 = vector.broadcast %c0_i32_117 : i32 to vector<2x32x128xi32>
      %c0_118 = arith.constant 0 : index
      %c0_119 = arith.constant 0 : index
      %c0_120 = arith.constant 0 : index
      %c0_121 = arith.constant 0 : index
      %123 = vector.load %arg4[%c0_118, %c0_119, %c0_120, %c0_121] : memref<1x2x32x128xi32, #tpu.memory_space<vmem>>, vector<1x2x32x128xi32>
      %124 = vector.shape_cast %123 : vector<1x2x32x128xi32> to vector<2x32x128xi32>
      %125 = vector.shape_cast %122 : vector<2x32x128xi32> to vector<1x2x32x128xi32>
      tpu.vector_store %arg4[%c0_118, %c0_119, %c0_120, %c0_121], %125 {strides = array<i32>} : memref<1x2x32x128xi32, #tpu.memory_space<vmem>>, vector<1x2x32x128xi32>,
      %c0_i32_122 = arith.constant 0 : i32
      %126 = vector.broadcast %c0_i32_122 : i32 to vector<2x32x128xi32>
      %c0_123 = arith.constant 0 : index
      %c0_124 = arith.constant 0 : index
      %c0_125 = arith.constant 0 : index
      %c0_126 = arith.constant 0 : index
      %127 = vector.load %arg5[%c0_123, %c0_124, %c0_125, %c0_126] : memref<1x2x32x128xi32, #tpu.memory_space<vmem>>, vector<1x2x32x128xi32>
      %128 = vector.shape_cast %127 : vector<1x2x32x128xi32> to vector<2x32x128xi32>
      %129 = vector.shape_cast %126 : vector<2x32x128xi32> to vector<1x2x32x128xi32>
      tpu.vector_store %arg5[%c0_123, %c0_124, %c0_125, %c0_126], %129 {strides = array<i32>} : memref<1x2x32x128xi32, #tpu.memory_space<vmem>>, vector<1x2x32x128xi32>,
      %c0_i32_127 = arith.constant 0 : i32
      %130 = vector.broadcast %c0_i32_127 : i32 to vector<2x32x128xi32>
      %c0_128 = arith.constant 0 : index
      %c0_129 = arith.constant 0 : index
      %c0_130 = arith.constant 0 : index
      %c0_131 = arith.constant 0 : index
      %131 = vector.load %arg6[%c0_128, %c0_129, %c0_130, %c0_131] : memref<1x2x32x128xi32, #tpu.memory_space<vmem>>, vector<1x2x32x128xi32>
      %132 = vector.shape_cast %131 : vector<1x2x32x128xi32> to vector<2x32x128xi32>
      %133 = vector.shape_cast %130 : vector<2x32x128xi32> to vector<1x2x32x128xi32>
      tpu.vector_store %arg6[%c0_128, %c0_129, %c0_130, %c0_131], %133 {strides = array<i32>} : memref<1x2x32x128xi32, #tpu.memory_space<vmem>>, vector<1x2x32x128xi32>,
    } else {
    }
    %c0 = arith.constant 0 : index
    %c0_1 = arith.constant 0 : index
    %c0_2 = arith.constant 0 : index
    %c0_3 = arith.constant 0 : index
    %3 = vector.load %arg2[%c0, %c0_1, %c0_2, %c0_3] : memref<2x2x8x128xi32, #tpu.memory_space<vmem>>, vector<2x2x8x128xi32>
    %c0_4 = arith.constant 0 : index
    %c0_5 = arith.constant 0 : index
    %c0_6 = arith.constant 0 : index
    %c0_7 = arith.constant 0 : index
    %4 = vector.load %arg3[%c0_4, %c0_5, %c0_6, %c0_7] : memref<2x2x8x128xi32, #tpu.memory_space<vmem>>, vector<2x2x8x128xi32>
    %5 = arith.cmpi eq, %3, %4 : vector<2x2x8x128xi32>
    %c0_i32_8 = arith.constant 0 : i32
    %6 = vector.broadcast %c0_i32_8 : i32 to vector<2x2x8x128xi32>
    %7 = arith.cmpi eq, %3, %6 : vector<2x2x8x128xi32>
    %c0_i32_9 = arith.constant 0 : i32
    %8 = vector.broadcast %c0_i32_9 : i32 to vector<2x2x8x128xi32>
    %9 = arith.cmpi eq, %4, %8 : vector<2x2x8x128xi32>
    %10 = arith.andi %5, %7 : vector<2x2x8x128xi1>
    %11 = arith.extui %7 : vector<2x2x8x128xi1> to vector<2x2x8x128xi32>
    %cst = arith.constant dense<0> : vector<2x8x128xi32>
    %12 = vector.multi_reduction <add>, %11, %cst [1] : vector<2x2x8x128xi32> to vector<2x8x128xi32>
    %13 = arith.extui %9 : vector<2x2x8x128xi1> to vector<2x2x8x128xi32>
    %cst_10 = arith.constant dense<0> : vector<2x8x128xi32>
    %14 = vector.multi_reduction <add>, %13, %cst_10 [1] : vector<2x2x8x128xi32> to vector<2x8x128xi32>
    %15 = arith.extui %10 : vector<2x2x8x128xi1> to vector<2x2x8x128xi32>
    %cst_11 = arith.constant dense<0> : vector<2x8x128xi32>
    %16 = vector.multi_reduction <add>, %15, %cst_11 [1] : vector<2x2x8x128xi32> to vector<2x8x128xi32>
    %c0_12 = arith.constant 0 : index
    %c0_13 = arith.constant 0 : index
    %c0_14 = arith.constant 0 : index
    %c0_15 = arith.constant 0 : index
    %17 = vector.load %arg5[%c0_12, %c0_13, %c0_14, %c0_15] : memref<1x2x32x128xi32, #tpu.memory_space<vmem>>, vector<1x2x8x128xi32>
    %18 = vector.shape_cast %17 : vector<1x2x8x128xi32> to vector<2x8x128xi32>
    %19 = arith.addi %18, %12 : vector<2x8x128xi32>
    %c0_16 = arith.constant 0 : index
    %c0_17 = arith.constant 0 : index
    %c0_18 = arith.constant 0 : index
    %c0_19 = arith.constant 0 : index
    %20 = vector.load %arg5[%c0_16, %c0_17, %c0_18, %c0_19] : memref<1x2x32x128xi32, #tpu.memory_space<vmem>>, vector<1x2x8x128xi32>
    %21 = vector.shape_cast %20 : vector<1x2x8x128xi32> to vector<2x8x128xi32>
    %22 = vector.shape_cast %19 : vector<2x8x128xi32> to vector<1x2x8x128xi32>
    tpu.vector_store %arg5[%c0_16, %c0_17, %c0_18, %c0_19], %22 {strides = array<i32>} : memref<1x2x32x128xi32, #tpu.memory_space<vmem>>, vector<1x2x8x128xi32>,
    %c0_20 = arith.constant 0 : index
    %c0_21 = arith.constant 0 : index
    %c0_22 = arith.constant 0 : index
    %c0_23 = arith.constant 0 : index
    %23 = vector.load %arg6[%c0_20, %c0_21, %c0_22, %c0_23] : memref<1x2x32x128xi32, #tpu.memory_space<vmem>>, vector<1x2x8x128xi32>
    %24 = vector.shape_cast %23 : vector<1x2x8x128xi32> to vector<2x8x128xi32>
    %25 = arith.addi %24, %14 : vector<2x8x128xi32>
    %c0_24 = arith.constant 0 : index
    %c0_25 = arith.constant 0 : index
    %c0_26 = arith.constant 0 : index
    %c0_27 = arith.constant 0 : index
    %26 = vector.load %arg6[%c0_24, %c0_25, %c0_26, %c0_27] : memref<1x2x32x128xi32, #tpu.memory_space<vmem>>, vector<1x2x8x128xi32>
    %27 = vector.shape_cast %26 : vector<1x2x8x128xi32> to vector<2x8x128xi32>
    %28 = vector.shape_cast %25 : vector<2x8x128xi32> to vector<1x2x8x128xi32>
    tpu.vector_store %arg6[%c0_24, %c0_25, %c0_26, %c0_27], %28 {strides = array<i32>} : memref<1x2x32x128xi32, #tpu.memory_space<vmem>>, vector<1x2x8x128xi32>,
    %c0_28 = arith.constant 0 : index
    %c0_29 = arith.constant 0 : index
    %c0_30 = arith.constant 0 : index
    %c0_31 = arith.constant 0 : index
    %29 = vector.load %arg4[%c0_28, %c0_29, %c0_30, %c0_31] : memref<1x2x32x128xi32, #tpu.memory_space<vmem>>, vector<1x2x8x128xi32>
    %30 = vector.shape_cast %29 : vector<1x2x8x128xi32> to vector<2x8x128xi32>
    %31 = arith.addi %30, %16 : vector<2x8x128xi32>
    %c0_32 = arith.constant 0 : index
    %c0_33 = arith.constant 0 : index
    %c0_34 = arith.constant 0 : index
    %c0_35 = arith.constant 0 : index
    %32 = vector.load %arg4[%c0_32, %c0_33, %c0_34, %c0_35] : memref<1x2x32x128xi32, #tpu.memory_space<vmem>>, vector<1x2x8x128xi32>
    %33 = vector.shape_cast %32 : vector<1x2x8x128xi32> to vector<2x8x128xi32>
    %34 = vector.shape_cast %31 : vector<2x8x128xi32> to vector<1x2x8x128xi32>
    tpu.vector_store %arg4[%c0_32, %c0_33, %c0_34, %c0_35], %34 {strides = array<i32>} : memref<1x2x32x128xi32, #tpu.memory_space<vmem>>, vector<1x2x8x128xi32>,
    %c1_i32 = arith.constant 1 : i32
    %35 = vector.broadcast %c1_i32 : i32 to vector<2x2x8x128xi32>
    %36 = arith.cmpi eq, %3, %35 : vector<2x2x8x128xi32>
    %c1_i32_36 = arith.constant 1 : i32
    %37 = vector.broadcast %c1_i32_36 : i32 to vector<2x2x8x128xi32>
    %38 = arith.cmpi eq, %4, %37 : vector<2x2x8x128xi32>
    %39 = arith.andi %5, %36 : vector<2x2x8x128xi1>
    %40 = arith.extui %36 : vector<2x2x8x128xi1> to vector<2x2x8x128xi32>
    %cst_37 = arith.constant dense<0> : vector<2x8x128xi32>
    %41 = vector.multi_reduction <add>, %40, %cst_37 [1] : vector<2x2x8x128xi32> to vector<2x8x128xi32>
    %42 = arith.extui %38 : vector<2x2x8x128xi1> to vector<2x2x8x128xi32>
    %cst_38 = arith.constant dense<0> : vector<2x8x128xi32>
    %43 = vector.multi_reduction <add>, %42, %cst_38 [1] : vector<2x2x8x128xi32> to vector<2x8x128xi32>
    %44 = arith.extui %39 : vector<2x2x8x128xi1> to vector<2x2x8x128xi32>
    %cst_39 = arith.constant dense<0> : vector<2x8x128xi32>
    %45 = vector.multi_reduction <add>, %44, %cst_39 [1] : vector<2x2x8x128xi32> to vector<2x8x128xi32>
    %c0_40 = arith.constant 0 : index
    %c0_41 = arith.constant 0 : index
    %c8 = arith.constant 8 : index
    %c0_42 = arith.constant 0 : index
    %46 = vector.load %arg5[%c0_40, %c0_41, %c8, %c0_42] : memref<1x2x32x128xi32, #tpu.memory_space<vmem>>, vector<1x2x8x128xi32>
    %47 = vector.shape_cast %46 : vector<1x2x8x128xi32> to vector<2x8x128xi32>
    %48 = arith.addi %47, %41 : vector<2x8x128xi32>
    %c0_43 = arith.constant 0 : index
    %c0_44 = arith.constant 0 : index
    %c8_45 = arith.constant 8 : index
    %c0_46 = arith.constant 0 : index
    %49 = vector.load %arg5[%c0_43, %c0_44, %c8_45, %c0_46] : memref<1x2x32x128xi32, #tpu.memory_space<vmem>>, vector<1x2x8x128xi32>
    %50 = vector.shape_cast %49 : vector<1x2x8x128xi32> to vector<2x8x128xi32>
    %51 = vector.shape_cast %48 : vector<2x8x128xi32> to vector<1x2x8x128xi32>
    tpu.vector_store %arg5[%c0_43, %c0_44, %c8_45, %c0_46], %51 {strides = array<i32>} : memref<1x2x32x128xi32, #tpu.memory_space<vmem>>, vector<1x2x8x128xi32>,
    %c0_47 = arith.constant 0 : index
    %c0_48 = arith.constant 0 : index
    %c8_49 = arith.constant 8 : index
    %c0_50 = arith.constant 0 : index
    %52 = vector.load %arg6[%c0_47, %c0_48, %c8_49, %c0_50] : memref<1x2x32x128xi32, #tpu.memory_space<vmem>>, vector<1x2x8x128xi32>
    %53 = vector.shape_cast %52 : vector<1x2x8x128xi32> to vector<2x8x128xi32>
    %54 = arith.addi %53, %43 : vector<2x8x128xi32>
    %c0_51 = arith.constant 0 : index
    %c0_52 = arith.constant 0 : index
    %c8_53 = arith.constant 8 : index
    %c0_54 = arith.constant 0 : index
    %55 = vector.load %arg6[%c0_51, %c0_52, %c8_53, %c0_54] : memref<1x2x32x128xi32, #tpu.memory_space<vmem>>, vector<1x2x8x128xi32>
    %56 = vector.shape_cast %55 : vector<1x2x8x128xi32> to vector<2x8x128xi32>
    %57 = vector.shape_cast %54 : vector<2x8x128xi32> to vector<1x2x8x128xi32>
    tpu.vector_store %arg6[%c0_51, %c0_52, %c8_53, %c0_54], %57 {strides = array<i32>} : memref<1x2x32x128xi32, #tpu.memory_space<vmem>>, vector<1x2x8x128xi32>,
    %c0_55 = arith.constant 0 : index
    %c0_56 = arith.constant 0 : index
    %c8_57 = arith.constant 8 : index
    %c0_58 = arith.constant 0 : index
    %58 = vector.load %arg4[%c0_55, %c0_56, %c8_57, %c0_58] : memref<1x2x32x128xi32, #tpu.memory_space<vmem>>, vector<1x2x8x128xi32>
    %59 = vector.shape_cast %58 : vector<1x2x8x128xi32> to vector<2x8x128xi32>
    %60 = arith.addi %59, %45 : vector<2x8x128xi32>
    %c0_59 = arith.constant 0 : index
    %c0_60 = arith.constant 0 : index
    %c8_61 = arith.constant 8 : index
    %c0_62 = arith.constant 0 : index
    %61 = vector.load %arg4[%c0_59, %c0_60, %c8_61, %c0_62] : memref<1x2x32x128xi32, #tpu.memory_space<vmem>>, vector<1x2x8x128xi32>
    %62 = vector.shape_cast %61 : vector<1x2x8x128xi32> to vector<2x8x128xi32>
    %63 = vector.shape_cast %60 : vector<2x8x128xi32> to vector<1x2x8x128xi32>
    tpu.vector_store %arg4[%c0_59, %c0_60, %c8_61, %c0_62], %63 {strides = array<i32>} : memref<1x2x32x128xi32, #tpu.memory_space<vmem>>, vector<1x2x8x128xi32>,
    %c2_i32 = arith.constant 2 : i32
    %64 = vector.broadcast %c2_i32 : i32 to vector<2x2x8x128xi32>
    %65 = arith.cmpi eq, %3, %64 : vector<2x2x8x128xi32>
    %c2_i32_63 = arith.constant 2 : i32
    %66 = vector.broadcast %c2_i32_63 : i32 to vector<2x2x8x128xi32>
    %67 = arith.cmpi eq, %4, %66 : vector<2x2x8x128xi32>
    %68 = arith.andi %5, %65 : vector<2x2x8x128xi1>
    %69 = arith.extui %65 : vector<2x2x8x128xi1> to vector<2x2x8x128xi32>
    %cst_64 = arith.constant dense<0> : vector<2x8x128xi32>
    %70 = vector.multi_reduction <add>, %69, %cst_64 [1] : vector<2x2x8x128xi32> to vector<2x8x128xi32>
    %71 = arith.extui %67 : vector<2x2x8x128xi1> to vector<2x2x8x128xi32>
    %cst_65 = arith.constant dense<0> : vector<2x8x128xi32>
    %72 = vector.multi_reduction <add>, %71, %cst_65 [1] : vector<2x2x8x128xi32> to vector<2x8x128xi32>
    %73 = arith.extui %68 : vector<2x2x8x128xi1> to vector<2x2x8x128xi32>
    %cst_66 = arith.constant dense<0> : vector<2x8x128xi32>
    %74 = vector.multi_reduction <add>, %73, %cst_66 [1] : vector<2x2x8x128xi32> to vector<2x8x128xi32>
    %c0_67 = arith.constant 0 : index
    %c0_68 = arith.constant 0 : index
    %c16 = arith.constant 16 : index
    %c0_69 = arith.constant 0 : index
    %75 = vector.load %arg5[%c0_67, %c0_68, %c16, %c0_69] : memref<1x2x32x128xi32, #tpu.memory_space<vmem>>, vector<1x2x8x128xi32>
    %76 = vector.shape_cast %75 : vector<1x2x8x128xi32> to vector<2x8x128xi32>
    %77 = arith.addi %76, %70 : vector<2x8x128xi32>
    %c0_70 = arith.constant 0 : index
    %c0_71 = arith.constant 0 : index
    %c16_72 = arith.constant 16 : index
    %c0_73 = arith.constant 0 : index
    %78 = vector.load %arg5[%c0_70, %c0_71, %c16_72, %c0_73] : memref<1x2x32x128xi32, #tpu.memory_space<vmem>>, vector<1x2x8x128xi32>
    %79 = vector.shape_cast %78 : vector<1x2x8x128xi32> to vector<2x8x128xi32>
    %80 = vector.shape_cast %77 : vector<2x8x128xi32> to vector<1x2x8x128xi32>
    tpu.vector_store %arg5[%c0_70, %c0_71, %c16_72, %c0_73], %80 {strides = array<i32>} : memref<1x2x32x128xi32, #tpu.memory_space<vmem>>, vector<1x2x8x128xi32>,
    %c0_74 = arith.constant 0 : index
    %c0_75 = arith.constant 0 : index
    %c16_76 = arith.constant 16 : index
    %c0_77 = arith.constant 0 : index
    %81 = vector.load %arg6[%c0_74, %c0_75, %c16_76, %c0_77] : memref<1x2x32x128xi32, #tpu.memory_space<vmem>>, vector<1x2x8x128xi32>
    %82 = vector.shape_cast %81 : vector<1x2x8x128xi32> to vector<2x8x128xi32>
    %83 = arith.addi %82, %72 : vector<2x8x128xi32>
    %c0_78 = arith.constant 0 : index
    %c0_79 = arith.constant 0 : index
    %c16_80 = arith.constant 16 : index
    %c0_81 = arith.constant 0 : index
    %84 = vector.load %arg6[%c0_78, %c0_79, %c16_80, %c0_81] : memref<1x2x32x128xi32, #tpu.memory_space<vmem>>, vector<1x2x8x128xi32>
    %85 = vector.shape_cast %84 : vector<1x2x8x128xi32> to vector<2x8x128xi32>
    %86 = vector.shape_cast %83 : vector<2x8x128xi32> to vector<1x2x8x128xi32>
    tpu.vector_store %arg6[%c0_78, %c0_79, %c16_80, %c0_81], %86 {strides = array<i32>} : memref<1x2x32x128xi32, #tpu.memory_space<vmem>>, vector<1x2x8x128xi32>,
    %c0_82 = arith.constant 0 : index
    %c0_83 = arith.constant 0 : index
    %c16_84 = arith.constant 16 : index
    %c0_85 = arith.constant 0 : index
    %87 = vector.load %arg4[%c0_82, %c0_83, %c16_84, %c0_85] : memref<1x2x32x128xi32, #tpu.memory_space<vmem>>, vector<1x2x8x128xi32>
    %88 = vector.shape_cast %87 : vector<1x2x8x128xi32> to vector<2x8x128xi32>
    %89 = arith.addi %88, %74 : vector<2x8x128xi32>
    %c0_86 = arith.constant 0 : index
    %c0_87 = arith.constant 0 : index
    %c16_88 = arith.constant 16 : index
    %c0_89 = arith.constant 0 : index
    %90 = vector.load %arg4[%c0_86, %c0_87, %c16_88, %c0_89] : memref<1x2x32x128xi32, #tpu.memory_space<vmem>>, vector<1x2x8x128xi32>
    %91 = vector.shape_cast %90 : vector<1x2x8x128xi32> to vector<2x8x128xi32>
    %92 = vector.shape_cast %89 : vector<2x8x128xi32> to vector<1x2x8x128xi32>
    tpu.vector_store %arg4[%c0_86, %c0_87, %c16_88, %c0_89], %92 {strides = array<i32>} : memref<1x2x32x128xi32, #tpu.memory_space<vmem>>, vector<1x2x8x128xi32>,
    %c3_i32 = arith.constant 3 : i32
    %93 = vector.broadcast %c3_i32 : i32 to vector<2x2x8x128xi32>
    %94 = arith.cmpi eq, %3, %93 : vector<2x2x8x128xi32>
    %c3_i32_90 = arith.constant 3 : i32
    %95 = vector.broadcast %c3_i32_90 : i32 to vector<2x2x8x128xi32>
    %96 = arith.cmpi eq, %4, %95 : vector<2x2x8x128xi32>
    %97 = arith.andi %5, %94 : vector<2x2x8x128xi1>
    %98 = arith.extui %94 : vector<2x2x8x128xi1> to vector<2x2x8x128xi32>
    %cst_91 = arith.constant dense<0> : vector<2x8x128xi32>
    %99 = vector.multi_reduction <add>, %98, %cst_91 [1] : vector<2x2x8x128xi32> to vector<2x8x128xi32>
    %100 = arith.extui %96 : vector<2x2x8x128xi1> to vector<2x2x8x128xi32>
    %cst_92 = arith.constant dense<0> : vector<2x8x128xi32>
    %101 = vector.multi_reduction <add>, %100, %cst_92 [1] : vector<2x2x8x128xi32> to vector<2x8x128xi32>
    %102 = arith.extui %97 : vector<2x2x8x128xi1> to vector<2x2x8x128xi32>
    %cst_93 = arith.constant dense<0> : vector<2x8x128xi32>
    %103 = vector.multi_reduction <add>, %102, %cst_93 [1] : vector<2x2x8x128xi32> to vector<2x8x128xi32>
    %c0_94 = arith.constant 0 : index
    %c0_95 = arith.constant 0 : index
    %c24 = arith.constant 24 : index
    %c0_96 = arith.constant 0 : index
    %104 = vector.load %arg5[%c0_94, %c0_95, %c24, %c0_96] : memref<1x2x32x128xi32, #tpu.memory_space<vmem>>, vector<1x2x8x128xi32>
    %105 = vector.shape_cast %104 : vector<1x2x8x128xi32> to vector<2x8x128xi32>
    %106 = arith.addi %105, %99 : vector<2x8x128xi32>
    %c0_97 = arith.constant 0 : index
    %c0_98 = arith.constant 0 : index
    %c24_99 = arith.constant 24 : index
    %c0_100 = arith.constant 0 : index
    %107 = vector.load %arg5[%c0_97, %c0_98, %c24_99, %c0_100] : memref<1x2x32x128xi32, #tpu.memory_space<vmem>>, vector<1x2x8x128xi32>
    %108 = vector.shape_cast %107 : vector<1x2x8x128xi32> to vector<2x8x128xi32>
    %109 = vector.shape_cast %106 : vector<2x8x128xi32> to vector<1x2x8x128xi32>
    tpu.vector_store %arg5[%c0_97, %c0_98, %c24_99, %c0_100], %109 {strides = array<i32>} : memref<1x2x32x128xi32, #tpu.memory_space<vmem>>, vector<1x2x8x128xi32>,
    %c0_101 = arith.constant 0 : index
    %c0_102 = arith.constant 0 : index
    %c24_103 = arith.constant 24 : index
    %c0_104 = arith.constant 0 : index
    %110 = vector.load %arg6[%c0_101, %c0_102, %c24_103, %c0_104] : memref<1x2x32x128xi32, #tpu.memory_space<vmem>>, vector<1x2x8x128xi32>
    %111 = vector.shape_cast %110 : vector<1x2x8x128xi32> to vector<2x8x128xi32>
    %112 = arith.addi %111, %101 : vector<2x8x128xi32>
    %c0_105 = arith.constant 0 : index
    %c0_106 = arith.constant 0 : index
    %c24_107 = arith.constant 24 : index
    %c0_108 = arith.constant 0 : index
    %113 = vector.load %arg6[%c0_105, %c0_106, %c24_107, %c0_108] : memref<1x2x32x128xi32, #tpu.memory_space<vmem>>, vector<1x2x8x128xi32>
    %114 = vector.shape_cast %113 : vector<1x2x8x128xi32> to vector<2x8x128xi32>
    %115 = vector.shape_cast %112 : vector<2x8x128xi32> to vector<1x2x8x128xi32>
    tpu.vector_store %arg6[%c0_105, %c0_106, %c24_107, %c0_108], %115 {strides = array<i32>} : memref<1x2x32x128xi32, #tpu.memory_space<vmem>>, vector<1x2x8x128xi32>,
    %c0_109 = arith.constant 0 : index
    %c0_110 = arith.constant 0 : index
    %c24_111 = arith.constant 24 : index
    %c0_112 = arith.constant 0 : index
    %116 = vector.load %arg4[%c0_109, %c0_110, %c24_111, %c0_112] : memref<1x2x32x128xi32, #tpu.memory_space<vmem>>, vector<1x2x8x128xi32>
    %117 = vector.shape_cast %116 : vector<1x2x8x128xi32> to vector<2x8x128xi32>
    %118 = arith.addi %117, %103 : vector<2x8x128xi32>
    %c0_113 = arith.constant 0 : index
    %c0_114 = arith.constant 0 : index
    %c24_115 = arith.constant 24 : index
    %c0_116 = arith.constant 0 : index
    %119 = vector.load %arg4[%c0_113, %c0_114, %c24_115, %c0_116] : memref<1x2x32x128xi32, #tpu.memory_space<vmem>>, vector<1x2x8x128xi32>
    %120 = vector.shape_cast %119 : vector<1x2x8x128xi32> to vector<2x8x128xi32>
    %121 = vector.shape_cast %118 : vector<2x8x128xi32> to vector<1x2x8x128xi32>
    tpu.vector_store %arg4[%c0_113, %c0_114, %c24_115, %c0_116], %121 {strides = array<i32>} : memref<1x2x32x128xi32, #tpu.memory_space<vmem>>, vector<1x2x8x128xi32>,
    return
  }
  func.func @transform_0(%arg0: i32, %arg1: i32) -> (i32, i32, i32, i32) {
    %c1_i32 = arith.constant 1 : i32
    %0 = arith.muli %arg0, %c1_i32 : i32
    %1 = arith.addi %0, %arg1 : i32
    %c0_i32 = arith.constant 0 : i32
    %c0_i32_0 = arith.constant 0 : i32
    %c0_i32_1 = arith.constant 0 : i32
    %c0_i32_2 = arith.constant 0 : i32
    return %c0_i32, %1, %c0_i32_0, %c0_i32_1 : i32, i32, i32, i32
  }
  func.func @transform_1(%arg0: i32, %arg1: i32) -> (i32, i32, i32, i32) {
    %c1_i32 = arith.constant 1 : i32
    %0 = arith.muli %arg0, %c1_i32 : i32
    %1 = arith.addi %0, %arg1 : i32
    %c0_i32 = arith.constant 0 : i32
    %c0_i32_0 = arith.constant 0 : i32
    %c0_i32_1 = arith.constant 0 : i32
    %c0_i32_2 = arith.constant 0 : i32
    return %c0_i32, %1, %c0_i32_0, %c0_i32_1 : i32, i32, i32, i32
  }
  func.func @transform_2(%arg0: i32, %arg1: i32) -> (i32, i32, i32, i32) {
    %c0_i32 = arith.constant 0 : i32
    %c0_i32_0 = arith.constant 0 : i32
    %c0_i32_1 = arith.constant 0 : i32
    %c0_i32_2 = arith.constant 0 : i32
    return %arg0, %c0_i32, %c0_i32_0, %c0_i32_1 : i32, i32, i32, i32
  }
  func.func @transform_3(%arg0: i32, %arg1: i32) -> (i32, i32, i32, i32) {
    %c0_i32 = arith.constant 0 : i32
    %c0_i32_0 = arith.constant 0 : i32
    %c0_i32_1 = arith.constant 0 : i32
    %c0_i32_2 = arith.constant 0 : i32
    return %arg0, %c0_i32, %c0_i32_0, %c0_i32_1 : i32, i32, i32, i32
  }
  func.func @transform_4(%arg0: i32, %arg1: i32) -> (i32, i32, i32, i32) {
    %c0_i32 = arith.constant 0 : i32
    %c0_i32_0 = arith.constant 0 : i32
    %c0_i32_1 = arith.constant 0 : i32
    %c0_i32_2 = arith.constant 0 : i32
    return %arg0, %c0_i32, %c0_i32_0, %c0_i32_1 : i32, i32, i32, i32
  }
}

</mosaic_0001>

<llo_original>
// kernel: dice_loss.1
$region0: #{dice_loss.1}
  #allocation0 [shape = 'u32[]', space=smem, size = 0x4, offset = 0x4, fixed_abs, tag = 'smem constant byte address 0x4 - core index']
  #allocation1 [shape = 'u32[72,128]{1,0:T(1,128)}', space=vmem, size = 0x9000, scoped, tag = 'internal scratch']
  %s0 = inlined_call_operand.vmem [shape: s32[2,4,8,128], index: 0, kind: input, shape index: {}]
  %s1 = inlined_call_operand.vmem [shape: s32[2,4,8,128], index: 1, kind: input, shape index: {}]
  %s2 = inlined_call_operand.vmem [shape: s32[2,2,32,128], index: 2, kind: output, shape index: {0}]
  %s3 = inlined_call_operand.vmem [shape: s32[2,2,32,128], index: 3, kind: output, shape index: {1}]
  %s4 = inlined_call_operand.vmem [shape: s32[2,2,32,128], index: 4, kind: output, shape index: {2}]
  %5 = xla_tuple %s2, %s3, %s4
  %s6 = sld [smem:[#allocation0]]
  $region137: #{dice_loss.1} parent=0
    _
  %s8 = ssub.s32 1, %s6
  %s9 = scalar_select 0, %s8, %s6
  $region1: #{dice_loss.1} parent=0
    #allocation2 [shape = 'u8[32768]{0}', space=vmem, size = 0x8000, scoped, tag = 'input window, operand 0']
    #allocation3 [shape = 'u8[32768]{0}', space=vmem, size = 0x8000, scoped, tag = 'input window, operand 1']
    loop: start=0, step=1, limit=4
    $region2: #{dice_loss.1} parent=1 // loop_pre_header
      _
    $region3: #{dice_loss.1} parent=1 // loop_header
      %s11 = sphi 0, %s15
      %p12 = scmp.ge.s32.totalorder %s11, 4
      %s18 = sphi 0, %s30
      %s19 = sphi 0, %s26
      %s20 = sphi 0, %s18
      %s21 = sphi 0, %s19
      %s22 = sphi 0, %s20
      %s23 = sphi 0, %s21
      %s35 = sphi 0, %s37
      %s38 = sphi 0, %s35
      %s39 = sphi 0, %s38
      %s55 = sphi 0, %s39
      %s63 = sphi 0, %s65
      %s66 = sphi 0, %s63
      %s67 = sphi 0, %s66
      %s83 = sphi 0, %s67
      %s89 = sphi 0, %s91
      %s92 = sphi 0, %s89
      %s93 = sphi 0, %s92
      %s109 = sphi 0, %s93
      %s115 = sphi 0, %s117
      %s118 = sphi 0, %s115
      %s119 = sphi 0, %s118
      %s135 = sphi 0, %s119
      %s141 = sphi 0, %s143
      %s144 = sphi 0, %s141
      %s145 = sphi 0, %s144
      %s161 = sphi 0, %s145
    $region4: #{dice_loss.1} parent=1 // loop_header_branch
      %14 = sbr.rel (%p12) target = $region8
    $region5: #{dice_loss.1} parent=1 // loop_body
      %s16 = ssub.s32 %s11, 1
      %s17 = ssub.s32 %s11, 2
      %s24 = sadd.s32 1, %s19
      %p25 = scmp.ge.s32.totalorder %s24, 1
      %s26 = scalar_select %p25, 0, %s24
      %s27 = sadd.s32 1, %s18
      %s28 = scalar_select %p25, %s27, %s18
      %p29 = scmp.ge.s32.totalorder %s28, 2
      %s30 = scalar_select %p29, 0, %s28
      %s31 = sadd.s32 %s18, %s19
      %s32 = sadd.s32 %s30, %s26
      %s33 = ssub.s32 %s31, %s32
      %p34 = scmp.eq.s32.totalorder %s33, 0
      %s36 = sadd.s32 %s35, 1
      %s37 = scalar_select %p34, %s35, %s36
      %p40 = pneg %p34
      %p41 = scmp.eq.s32.totalorder %s11, 1
      %p42 = por %p40, %p41
      %p43 = scmp.ne.s32.totalorder %s35, %s38
      %p44 = scmp.eq.s32.totalorder %s11, 0
      %p45 = por %p43, %p44
      %p46 = scmp.ne.s32.totalorder %s35, %s38
      %p47 = scmp.eq.s32.totalorder %s16, 1
      %p48 = por %p46, %p47
      %p49 = scmp.ne.s32.totalorder %s38, %s39
      %p50 = scmp.eq.s32.totalorder %s16, 0
      %p51 = por %p49, %p50
      %p52 = scmp.ne.s32.totalorder %s38, %s39
      %p53 = scmp.eq.s32.totalorder %s17, 1
      %p54 = por %p52, %p53
      %p56 = scmp.ne.s32.totalorder %s39, %s55
      %p57 = scmp.eq.s32.totalorder %s17, 0
      %p58 = por %p56, %p57
      %s59 = sadd.s32 %s18, %s19
      %s60 = sadd.s32 %s30, %s26
      %s61 = ssub.s32 %s59, %s60
      %p62 = scmp.eq.s32.totalorder %s61, 0
      %s64 = sadd.s32 %s63, 1
      %s65 = scalar_select %p62, %s63, %s64
      %p68 = pneg %p62
      %p69 = scmp.eq.s32.totalorder %s11, 1
      %p70 = por %p68, %p69
      %p71 = scmp.ne.s32.totalorder %s63, %s66
      %p72 = scmp.eq.s32.totalorder %s11, 0
      %p73 = por %p71, %p72
      %p74 = scmp.ne.s32.totalorder %s63, %s66
      %p75 = scmp.eq.s32.totalorder %s16, 1
      %p76 = por %p74, %p75
      %p77 = scmp.ne.s32.totalorder %s66, %s67
      %p78 = scmp.eq.s32.totalorder %s16, 0
      %p79 = por %p77, %p78
      %p80 = scmp.ne.s32.totalorder %s66, %s67
      %p81 = scmp.eq.s32.totalorder %s17, 1
      %p82 = por %p80, %p81
      %p84 = scmp.ne.s32.totalorder %s67, %s83
      %p85 = scmp.eq.s32.totalorder %s17, 0
      %p86 = por %p84, %p85
      %s87 = ssub.s32 %s18, %s30
      %p88 = scmp.eq.s32.totalorder %s87, 0
      %s90 = sadd.s32 %s89, 1
      %s91 = scalar_select %p88, %s89, %s90
      %p94 = pneg %p88
      %p95 = scmp.eq.s32.totalorder %s11, 1
      %p96 = por %p94, %p95
      %p97 = scmp.ne.s32.totalorder %s89, %s92
      %p98 = scmp.eq.s32.totalorder %s11, 0
      %p99 = por %p97, %p98
      %p100 = scmp.ne.s32.totalorder %s89, %s92
      %p101 = scmp.eq.s32.totalorder %s16, 1
      %p102 = por %p100, %p101
      %p103 = scmp.ne.s32.totalorder %s92, %s93
      %p104 = scmp.eq.s32.totalorder %s16, 0
      %p105 = por %p103, %p104
      %p106 = scmp.ne.s32.totalorder %s92, %s93
      %p107 = scmp.eq.s32.totalorder %s17, 1
      %p108 = por %p106, %p107
      %p110 = scmp.ne.s32.totalorder %s93, %s109
      %p111 = scmp.eq.s32.totalorder %s17, 0
      %p112 = por %p110, %p111
      %s113 = ssub.s32 %s18, %s30
      %p114 = scmp.eq.s32.totalorder %s113, 0
      %s116 = sadd.s32 %s115, 1
      %s117 = scalar_select %p114, %s115, %s116
      %p120 = pneg %p114
      %p121 = scmp.eq.s32.totalorder %s11, 1
      %p122 = por %p120, %p121
      %p123 = scmp.ne.s32.totalorder %s115, %s118
      %p124 = scmp.eq.s32.totalorder %s11, 0
      %p125 = por %p123, %p124
      %p126 = scmp.ne.s32.totalorder %s115, %s118
      %p127 = scmp.eq.s32.totalorder %s16, 1
      %p128 = por %p126, %p127
      %p129 = scmp.ne.s32.totalorder %s118, %s119
      %p130 = scmp.eq.s32.totalorder %s16, 0
      %p131 = por %p129, %p130
      %p132 = scmp.ne.s32.totalorder %s118, %s119
      %p133 = scmp.eq.s32.totalorder %s17, 1
      %p134 = por %p132, %p133
      %p136 = scmp.ne.s32.totalorder %s119, %s135
      %p137 = scmp.eq.s32.totalorder %s17, 0
      %p138 = por %p136, %p137
      %s139 = ssub.s32 %s18, %s30
      %p140 = scmp.eq.s32.totalorder %s139, 0
      %s142 = sadd.s32 %s141, 1
      %s143 = scalar_select %p140, %s141, %s142
      %p146 = pneg %p140
      %p147 = scmp.eq.s32.totalorder %s11, 1
      %p148 = por %p146, %p147
      %p149 = scmp.ne.s32.totalorder %s141, %s144
      %p150 = scmp.eq.s32.totalorder %s11, 0
      %p151 = por %p149, %p150
      %p152 = scmp.ne.s32.totalorder %s141, %s144
      %p153 = scmp.eq.s32.totalorder %s16, 1
      %p154 = por %p152, %p153
      %p155 = scmp.ne.s32.totalorder %s144, %s145
      %p156 = scmp.eq.s32.totalorder %s16, 0
      %p157 = por %p155, %p156
      %p158 = scmp.ne.s32.totalorder %s144, %s145
      %p159 = scmp.eq.s32.totalorder %s17, 1
      %p160 = por %p158, %p159
      %p162 = scmp.ne.s32.totalorder %s145, %s161
      %p163 = scmp.eq.s32.totalorder %s17, 0
      %p164 = por %p162, %p163
      %p165 = scmp.le.s32.totalorder 1, %s11
      %p166 = scmp.lt.s32.totalorder %s11, 3
      %p167 = pnand %p165, %p166
      %p168 = pneg %p167
      // Predicated region
      $region9: #{dice_loss.1} parent=5 // pred_check
        _
      $region10: #{dice_loss.1} parent=5 // pred_check_branch
        %170 = sbr.rel (%p167) target = $region12
      $region11: #{dice_loss.1} parent=5 // pred_region
        %s171 = ssub.s32 %s11, 1
      $region12: #{dice_loss.1} parent=5 // pred_fallthru
        _
      %p172 = scmp.lt.s32.totalorder %s11, 2
      // Predicated region
      $region13: #{dice_loss.1} parent=5 // pred_check
        %p173 = pneg %p172
      $region14: #{dice_loss.1} parent=5 // pred_check_branch
        %175 = sbr.rel (%p173) target = $region16
      $region15: #{dice_loss.1} parent=5 // pred_region
        // Predicated region
        $region17: #{dice_loss.1} parent=15 // pred_check
          %p176 = pneg %p45
        $region18: #{dice_loss.1} parent=15 // pred_check_branch
          %178 = sbr.rel (%p176) target = $region20
        $region19: #{dice_loss.1} parent=15 // pred_region
          %s179 = sand.u32 %s35, 1
          %s180 = sand.u32 %s35, 1
          %s181 = smul.addr %s180, 32
          %s182 = scalar_lea.vmem [#allocation2], %s181
          %s183 = sadd.s32 %s18, %s19
          %s184 = smul.u32 2, %s183
          %s185 = smul.addr %s184, 8
          %s186 = scalar_lea.vmem %s0, %s185
          // Predicated region
          $region21: #{dice_loss.1} parent=19 // pred_check
            _
          $region22: #{dice_loss.1} parent=19 // pred_check_branch
            %188 = sbr.rel (0) target = $region24
          $region23: #{dice_loss.1} parent=19 // pred_region
            // Predicated region
            $region25: #{dice_loss.1} parent=23 // pred_check
              _
            $region26: #{dice_loss.1} parent=23 // pred_check_branch
              %190 = sbr.rel (0) target = $region28
            $region27: #{dice_loss.1} parent=23 // pred_region
              // Predicated region
              $region40: #{dice_loss.1} parent=27 // pred_check
                _
              $region41: #{dice_loss.1} parent=27 // pred_check_branch
                %212 = sbr.rel (0) target = $region43
              $region42: #{dice_loss.1} parent=27 // pred_region
                loop: start=0, step=1, limit=1
                $region44: #{dice_loss.1} parent=42 // loop_pre_header
                  _
                $region45: #{dice_loss.1} parent=42 // loop_header
                  %s214 = sphi 0, %s218
                  %p215 = scmp.ge.s32.totalorder %s214, 1
                  %s219 = sphi %s186, %s186
                  %s220 = sphi %s182, %s182
                $region46: #{dice_loss.1} parent=42 // loop_header_branch
                  %217 = sbr.rel (%p215) target = $region50
                $region47: #{dice_loss.1} parent=42 // loop_body
                  %v221 = vld [vmem:[%s219] sm:$0xff]
                  %222 = vst [vmem:[%s220] sm:$0xff] %v221
                  %v223 = vld [vmem:[%s219 + $0x8] sm:$0xff]
                  %224 = vst [vmem:[%s220 + $0x8] sm:$0xff] %v223
                  %v225 = vld [vmem:[%s219 + $0x20] sm:$0xff]
                  %226 = vst [vmem:[%s220 + $0x10] sm:$0xff] %v225
                  %v227 = vld [vmem:[%s219 + $0x28] sm:$0xff]
                  %228 = vst [vmem:[%s220 + $0x18] sm:$0xff] %v227
                $region48: #{dice_loss.1} parent=42 // loop_footer
                  %s218 = sadd.s32 1, %s214
                $region49: #{dice_loss.1} parent=42 // loop_footer_branch
                  %213 = sbr.rel target = $region45
                $region50: #{dice_loss.1} parent=42 // loop_exit
                  _
              $region43: #{dice_loss.1} parent=27 // pred_fallthru
                _
              // Predicated region
              $region51: #{dice_loss.1} parent=27 // pred_check
                _
              $region52: #{dice_loss.1} parent=27 // pred_check_branch
                %230 = sbr.rel target = $region54
              $region53: #{dice_loss.1} parent=27 // pred_region
                _
              $region54: #{dice_loss.1} parent=27 // pred_fallthru
                _
            $region28: #{dice_loss.1} parent=23 // pred_fallthru
              _
            // Predicated region
            $region29: #{dice_loss.1} parent=23 // pred_check
              _
            $region30: #{dice_loss.1} parent=23 // pred_check_branch
              %192 = sbr.rel target = $region32
            $region31: #{dice_loss.1} parent=23 // pred_region
              %s194 = ssub.s32 256, 1
              loop: start=0, step=1, limit=1
              $region33: #{dice_loss.1} parent=31 // loop_pre_header
                _
              $region34: #{dice_loss.1} parent=31 // loop_header
                %s196 = sphi 0, %s200
                %p197 = scmp.ge.s32.totalorder %s196, 1
                %s201 = sphi %s186, %s186
                %s202 = sphi %s182, %s182
              $region35: #{dice_loss.1} parent=31 // loop_header_branch
                %199 = sbr.rel (%p197) target = $region39
              $region36: #{dice_loss.1} parent=31 // loop_body
                %v203 = vld [vmem:[%s201] sm:%s194]
                %204 = vst [vmem:[%s202] sm:%s194] %v203
                %v205 = vld [vmem:[%s201 + $0x8] sm:%s194]
                %206 = vst [vmem:[%s202 + $0x8] sm:%s194] %v205
                %v207 = vld [vmem:[%s201 + $0x20] sm:%s194]
                %208 = vst [vmem:[%s202 + $0x10] sm:%s194] %v207
                %v209 = vld [vmem:[%s201 + $0x28] sm:%s194]
                %210 = vst [vmem:[%s202 + $0x18] sm:%s194] %v209
              $region37: #{dice_loss.1} parent=31 // loop_footer
                %s200 = sadd.s32 1, %s196
              $region38: #{dice_loss.1} parent=31 // loop_footer_branch
                %195 = sbr.rel target = $region34
              $region39: #{dice_loss.1} parent=31 // loop_exit
                _
            $region32: #{dice_loss.1} parent=23 // pred_fallthru
              _
          $region24: #{dice_loss.1} parent=19 // pred_fallthru
            _
          %231 = vnop
        $region20: #{dice_loss.1} parent=15 // pred_fallthru
          _
        // Predicated region
        $region55: #{dice_loss.1} parent=15 // pred_check
          %p232 = pneg %p73
        $region56: #{dice_loss.1} parent=15 // pred_check_branch
          %234 = sbr.rel (%p232) target = $region58
        $region57: #{dice_loss.1} parent=15 // pred_region
          %s235 = sand.u32 %s63, 1
          %s236 = sand.u32 %s63, 1
          %s237 = smul.addr %s236, 32
          %s238 = scalar_lea.vmem [#allocation3], %s237
          %s239 = sadd.s32 %s18, %s19
          %s240 = smul.u32 2, %s239
          %s241 = smul.addr %s240, 8
          %s242 = scalar_lea.vmem %s1, %s241
          // Predicated region
          $region59: #{dice_loss.1} parent=57 // pred_check
            _
          $region60: #{dice_loss.1} parent=57 // pred_check_branch
            %244 = sbr.rel (0) target = $region62
          $region61: #{dice_loss.1} parent=57 // pred_region
            // Predicated region
            $region63: #{dice_loss.1} parent=61 // pred_check
              _
            $region64: #{dice_loss.1} parent=61 // pred_check_branch
              %246 = sbr.rel (0) target = $region66
            $region65: #{dice_loss.1} parent=61 // pred_region
              // Predicated region
              $region78: #{dice_loss.1} parent=65 // pred_check
                _
              $region79: #{dice_loss.1} parent=65 // pred_check_branch
                %268 = sbr.rel (0) target = $region81
              $region80: #{dice_loss.1} parent=65 // pred_region
                loop: start=0, step=1, limit=1
                $region82: #{dice_loss.1} parent=80 // loop_pre_header
                  _
                $region83: #{dice_loss.1} parent=80 // loop_header
                  %s270 = sphi 0, %s274
                  %p271 = scmp.ge.s32.totalorder %s270, 1
                  %s275 = sphi %s242, %s242
                  %s276 = sphi %s238, %s238
                $region84: #{dice_loss.1} parent=80 // loop_header_branch
                  %273 = sbr.rel (%p271) target = $region88
                $region85: #{dice_loss.1} parent=80 // loop_body
                  %v277 = vld [vmem:[%s275] sm:$0xff]
                  %278 = vst [vmem:[%s276] sm:$0xff] %v277
                  %v279 = vld [vmem:[%s275 + $0x8] sm:$0xff]
                  %280 = vst [vmem:[%s276 + $0x8] sm:$0xff] %v279
                  %v281 = vld [vmem:[%s275 + $0x20] sm:$0xff]
                  %282 = vst [vmem:[%s276 + $0x10] sm:$0xff] %v281
                  %v283 = vld [vmem:[%s275 + $0x28] sm:$0xff]
                  %284 = vst [vmem:[%s276 + $0x18] sm:$0xff] %v283
                $region86: #{dice_loss.1} parent=80 // loop_footer
                  %s274 = sadd.s32 1, %s270
                $region87: #{dice_loss.1} parent=80 // loop_footer_branch
                  %269 = sbr.rel target = $region83
                $region88: #{dice_loss.1} parent=80 // loop_exit
                  _
              $region81: #{dice_loss.1} parent=65 // pred_fallthru
                _
              // Predicated region
              $region89: #{dice_loss.1} parent=65 // pred_check
                _
              $region90: #{dice_loss.1} parent=65 // pred_check_branch
                %286 = sbr.rel target = $region92
              $region91: #{dice_loss.1} parent=65 // pred_region
                _
              $region92: #{dice_loss.1} parent=65 // pred_fallthru
                _
            $region66: #{dice_loss.1} parent=61 // pred_fallthru
              _
            // Predicated region
            $region67: #{dice_loss.1} parent=61 // pred_check
              _
            $region68: #{dice_loss.1} parent=61 // pred_check_branch
              %248 = sbr.rel target = $region70
            $region69: #{dice_loss.1} parent=61 // pred_region
              %s250 = ssub.s32 256, 1
              loop: start=0, step=1, limit=1
              $region71: #{dice_loss.1} parent=69 // loop_pre_header
                _
              $region72: #{dice_loss.1} parent=69 // loop_header
                %s252 = sphi 0, %s256
                %p253 = scmp.ge.s32.totalorder %s252, 1
                %s257 = sphi %s242, %s242
                %s258 = sphi %s238, %s238
              $region73: #{dice_loss.1} parent=69 // loop_header_branch
                %255 = sbr.rel (%p253) target = $region77
              $region74: #{dice_loss.1} parent=69 // loop_body
                %v259 = vld [vmem:[%s257] sm:%s250]
                %260 = vst [vmem:[%s258] sm:%s250] %v259
                %v261 = vld [vmem:[%s257 + $0x8] sm:%s250]
                %262 = vst [vmem:[%s258 + $0x8] sm:%s250] %v261
                %v263 = vld [vmem:[%s257 + $0x20] sm:%s250]
                %264 = vst [vmem:[%s258 + $0x10] sm:%s250] %v263
                %v265 = vld [vmem:[%s257 + $0x28] sm:%s250]
                %266 = vst [vmem:[%s258 + $0x18] sm:%s250] %v265
              $region75: #{dice_loss.1} parent=69 // loop_footer
                %s256 = sadd.s32 1, %s252
              $region76: #{dice_loss.1} parent=69 // loop_footer_branch
                %251 = sbr.rel target = $region72
              $region77: #{dice_loss.1} parent=69 // loop_exit
                _
            $region70: #{dice_loss.1} parent=61 // pred_fallthru
              _
          $region62: #{dice_loss.1} parent=57 // pred_fallthru
            _
          %287 = vnop
        $region58: #{dice_loss.1} parent=15 // pred_fallthru
          _
      $region16: #{dice_loss.1} parent=5 // pred_fallthru
        _
      %p288 = scmp.le.s32.totalorder 1, %s11
      %p289 = scmp.lt.s32.totalorder %s11, 3
      %p290 = pnand %p288, %p289
      %p291 = pneg %p290
      // Predicated region
      $region93: #{dice_loss.1} parent=5 // pred_check
        _
      $region94: #{dice_loss.1} parent=5 // pred_check_branch
        %293 = sbr.rel (%p290) target = $region96
      $region95: #{dice_loss.1} parent=5 // pred_region
        %s294 = ssub.s32 %s11, 1
        %s295 = sand.u32 %s38, 1
        %s296 = sand.u32 %s38, 1
        %s297 = smul.addr %s296, 32
        %s298 = scalar_lea.vmem [#allocation2], %s297
        // Predicated region
        $region97: #{dice_loss.1} parent=95 // pred_check
          %p299 = pneg %p51
        $region98: #{dice_loss.1} parent=95 // pred_check_branch
          %301 = sbr.rel (%p299) target = $region100
        $region99: #{dice_loss.1} parent=95 // pred_region
          _
        $region100: #{dice_loss.1} parent=95 // pred_fallthru
          _
        %s302 = sand.u32 %s66, 1
        %s303 = sand.u32 %s66, 1
        %s304 = smul.addr %s303, 32
        %s305 = scalar_lea.vmem [#allocation3], %s304
        // Predicated region
        $region101: #{dice_loss.1} parent=95 // pred_check
          %p306 = pneg %p79
        $region102: #{dice_loss.1} parent=95 // pred_check_branch
          %308 = sbr.rel (%p306) target = $region104
        $region103: #{dice_loss.1} parent=95 // pred_region
          _
        $region104: #{dice_loss.1} parent=95 // pred_fallthru
          _
        %s309 = sand.u32 %s38, 1
        %s310 = sand.u32 %s38, 1
        %s311 = smul.addr %s310, 32
        %s312 = scalar_lea.vmem [#allocation2], %s311
        %p313 = pneg %p51
        %p314 = pneg %p48
        %s315 = sand.u32 %s66, 1
        %s316 = sand.u32 %s66, 1
        %s317 = smul.addr %s316, 32
        %s318 = scalar_lea.vmem [#allocation3], %s317
        %p319 = pneg %p79
        %p320 = pneg %p76
        %p321 = pneg %p105
        %p322 = pneg %p102
        %p323 = scmp.lt.s32.totalorder %s20, 1
        %s324 = scalar_select %p323, %s20, 1
        %s325 = smul.addr %s324, 8
        %s326 = smul.addr %s325, 8
        %s327 = scalar_lea.vmem %s2, %s326
        %p328 = pneg %p131
        %p329 = pneg %p128
        %p330 = scmp.lt.s32.totalorder %s20, 1
        %s331 = scalar_select %p330, %s20, 1
        %s332 = smul.addr %s331, 8
        %s333 = smul.addr %s332, 8
        %s334 = scalar_lea.vmem %s3, %s333
        %p335 = pneg %p157
        %p336 = pneg %p154
        %p337 = scmp.lt.s32.totalorder %s20, 1
        %s338 = scalar_select %p337, %s20, 1
        %s339 = smul.addr %s338, 8
        %s340 = smul.addr %s339, 8
        %s341 = scalar_lea.vmem %s4, %s340
        %s342 = sadd.s32 %s20, %s21
        %s343 = smul.u32 2, %s342
        %s344 = sadd.s32 %s20, %s21
        %s345 = smul.u32 2, %s344
        %p346 = scmp.lt.s32.totalorder %s20, 1
        %s347 = scalar_select %p346, %s20, 1
        %s348 = smul.addr %s347, 8
        %s349 = smul.addr %s348, 8
        %s350 = scalar_lea.vmem %s2, %s349
        %p351 = scmp.lt.s32.totalorder %s20, 1
        %s352 = scalar_select %p351, %s20, 1
        %s353 = smul.addr %s352, 8
        %s354 = smul.addr %s353, 8
        %s355 = scalar_lea.vmem %s3, %s354
        %p356 = scmp.lt.s32.totalorder %s20, 1
        %s357 = scalar_select %p356, %s20, 1
        %s358 = smul.addr %s357, 8
        %s359 = smul.addr %s358, 8
        %s360 = scalar_lea.vmem %s4, %s359
        %p361 = scmp.eq.s32.totalorder %s21, 0
        // Predicated region
        $region105: #{dice_loss.1} parent=95 // pred_check
          %p362 = pneg %p361
        $region106: #{dice_loss.1} parent=95 // pred_check_branch
          %364 = sbr.rel (%p362) target = $region108
        $region107: #{dice_loss.1} parent=95 // pred_region
          %365 = vst [vmem:[%s350] sm:$0xff] 0
          %366 = vst [vmem:[%s350 + $0x8] sm:$0xff] 0
          %367 = vst [vmem:[%s350 + $0x10] sm:$0xff] 0
          %368 = vst [vmem:[%s350 + $0x18] sm:$0xff] 0
          %369 = vst [vmem:[%s350 + $0x20] sm:$0xff] 0
          %370 = vst [vmem:[%s350 + $0x28] sm:$0xff] 0
          %371 = vst [vmem:[%s350 + $0x30] sm:$0xff] 0
          %372 = vst [vmem:[%s350 + $0x38] sm:$0xff] 0
          %373 = vst [vmem:[%s355] sm:$0xff] 0
          %374 = vst [vmem:[%s355 + $0x8] sm:$0xff] 0
          %375 = vst [vmem:[%s355 + $0x10] sm:$0xff] 0
          %376 = vst [vmem:[%s355 + $0x18] sm:$0xff] 0
          %377 = vst [vmem:[%s355 + $0x20] sm:$0xff] 0
          %378 = vst [vmem:[%s355 + $0x28] sm:$0xff] 0
          %379 = vst [vmem:[%s355 + $0x30] sm:$0xff] 0
          %380 = vst [vmem:[%s355 + $0x38] sm:$0xff] 0
          %381 = vst [vmem:[%s360] sm:$0xff] 0
          %382 = vst [vmem:[%s360 + $0x8] sm:$0xff] 0
          %383 = vst [vmem:[%s360 + $0x10] sm:$0xff] 0
          %384 = vst [vmem:[%s360 + $0x18] sm:$0xff] 0
          %385 = vst [vmem:[%s360 + $0x20] sm:$0xff] 0
          %386 = vst [vmem:[%s360 + $0x28] sm:$0xff] 0
          %387 = vst [vmem:[%s360 + $0x30] sm:$0xff] 0
          %388 = vst [vmem:[%s360 + $0x38] sm:$0xff] 0
        $region108: #{dice_loss.1} parent=95 // pred_fallthru
          _
        %v389 = vld [vmem:[%s298] sm:$0xff]
        %v390 = vld [vmem:[%s298 + $0x8] sm:$0xff]
        %v391 = vld [vmem:[%s298 + $0x10] sm:$0xff]
        %v392 = vld [vmem:[%s298 + $0x18] sm:$0xff]
        %v393 = vld [vmem:[%s305] sm:$0xff]
        %v394 = vld [vmem:[%s305 + $0x8] sm:$0xff]
        %v395 = vld [vmem:[%s305 + $0x10] sm:$0xff]
        %v396 = vld [vmem:[%s305 + $0x18] sm:$0xff]
        %vm397 = vcmp.eq.s32.totalorder %v389, %v393
        %vm398 = vcmp.eq.s32.totalorder %v390, %v394
        %vm399 = vcmp.eq.s32.totalorder %v391, %v395
        %vm400 = vcmp.eq.s32.totalorder %v392, %v396
        %vm401 = vcmp.eq.s32.totalorder %v389, 0
        %vm402 = vcmp.eq.s32.totalorder %v390, 0
        %vm403 = vcmp.eq.s32.totalorder %v391, 0
        %vm404 = vcmp.eq.s32.totalorder %v392, 0
        %vm405 = vcmp.eq.s32.totalorder %v393, 0
        %vm406 = vcmp.eq.s32.totalorder %v394, 0
        %vm407 = vcmp.eq.s32.totalorder %v395, 0
        %vm408 = vcmp.eq.s32.totalorder %v396, 0
        %vm409 = vmand %vm397, %vm401
        %vm410 = vmand %vm398, %vm402
        %vm411 = vmand %vm399, %vm403
        %vm412 = vmand %vm400, %vm404
        %v413 = vsel %vm401, 1, 0
        %v414 = vsel %vm402, 1, 0
        %v415 = vsel %vm403, 1, 0
        %v416 = vsel %vm404, 1, 0
        %v417 = vadd.s32 %v413, %v414
        %v418 = vadd.s32 %v415, %v416
        %v419 = vsel %vm405, 1, 0
        %v420 = vsel %vm406, 1, 0
        %v421 = vsel %vm407, 1, 0
        %v422 = vsel %vm408, 1, 0
        %v423 = vadd.s32 %v419, %v420
        %v424 = vadd.s32 %v421, %v422
        %v425 = vsel %vm409, 1, 0
        %v426 = vsel %vm410, 1, 0
        %v427 = vsel %vm411, 1, 0
        %v428 = vsel %vm412, 1, 0
        %v429 = vadd.s32 %v425, %v426
        %v430 = vadd.s32 %v427, %v428
        %v431 = vld [vmem:[%s355] sm:$0xff]
        %v432 = vld [vmem:[%s355 + $0x20] sm:$0xff]
        %v433 = vadd.s32 %v431, %v417
        %v434 = vadd.s32 %v432, %v418
        %435 = vst [vmem:[%s355] sm:$0xff] %v433
        %436 = vst [vmem:[%s355 + $0x20] sm:$0xff] %v434
        %v437 = vld [vmem:[%s360] sm:$0xff]
        %v438 = vld [vmem:[%s360 + $0x20] sm:$0xff]
        %v439 = vadd.s32 %v437, %v423
        %v440 = vadd.s32 %v438, %v424
        %441 = vst [vmem:[%s360] sm:$0xff] %v439
        %442 = vst [vmem:[%s360 + $0x20] sm:$0xff] %v440
        %v443 = vld [vmem:[%s350] sm:$0xff]
        %v444 = vld [vmem:[%s350 + $0x20] sm:$0xff]
        %v445 = vadd.s32 %v443, %v429
        %v446 = vadd.s32 %v444, %v430
        %447 = vst [vmem:[%s350] sm:$0xff] %v445
        %448 = vst [vmem:[%s350 + $0x20] sm:$0xff] %v446
        %vm449 = vcmp.eq.s32.totalorder %v389, 1
        %vm450 = vcmp.eq.s32.totalorder %v390, 1
        %vm451 = vcmp.eq.s32.totalorder %v391, 1
        %vm452 = vcmp.eq.s32.totalorder %v392, 1
        %vm453 = vcmp.eq.s32.totalorder %v393, 1
        %vm454 = vcmp.eq.s32.totalorder %v394, 1
        %vm455 = vcmp.eq.s32.totalorder %v395, 1
        %vm456 = vcmp.eq.s32.totalorder %v396, 1
        %vm457 = vmand %vm397, %vm449
        %vm458 = vmand %vm398, %vm450
        %vm459 = vmand %vm399, %vm451
        %vm460 = vmand %vm400, %vm452
        %v461 = vsel %vm449, 1, 0
        %v462 = vsel %vm450, 1, 0
        %v463 = vsel %vm451, 1, 0
        %v464 = vsel %vm452, 1, 0
        %v465 = vadd.s32 %v461, %v462
        %v466 = vadd.s32 %v463, %v464
        %v467 = vsel %vm453, 1, 0
        %v468 = vsel %vm454, 1, 0
        %v469 = vsel %vm455, 1, 0
        %v470 = vsel %vm456, 1, 0
        %v471 = vadd.s32 %v467, %v468
        %v472 = vadd.s32 %v469, %v470
        %v473 = vsel %vm457, 1, 0
        %v474 = vsel %vm458, 1, 0
        %v475 = vsel %vm459, 1, 0
        %v476 = vsel %vm460, 1, 0
        %v477 = vadd.s32 %v473, %v474
        %v478 = vadd.s32 %v475, %v476
        %v479 = vld [vmem:[%s355 + $0x8] sm:$0xff]
        %v480 = vld [vmem:[%s355 + $0x28] sm:$0xff]
        %v481 = vadd.s32 %v479, %v465
        %v482 = vadd.s32 %v480, %v466
        %483 = vst [vmem:[%s355 + $0x8] sm:$0xff] %v481
        %484 = vst [vmem:[%s355 + $0x28] sm:$0xff] %v482
        %v485 = vld [vmem:[%s360 + $0x8] sm:$0xff]
        %v486 = vld [vmem:[%s360 + $0x28] sm:$0xff]
        %v487 = vadd.s32 %v485, %v471
        %v488 = vadd.s32 %v486, %v472
        %489 = vst [vmem:[%s360 + $0x8] sm:$0xff] %v487
        %490 = vst [vmem:[%s360 + $0x28] sm:$0xff] %v488
        %v491 = vld [vmem:[%s350 + $0x8] sm:$0xff]
        %v492 = vld [vmem:[%s350 + $0x28] sm:$0xff]
        %v493 = vadd.s32 %v491, %v477
        %v494 = vadd.s32 %v492, %v478
        %495 = vst [vmem:[%s350 + $0x8] sm:$0xff] %v493
        %496 = vst [vmem:[%s350 + $0x28] sm:$0xff] %v494
        %vm497 = vcmp.eq.s32.totalorder %v389, 2
        %vm498 = vcmp.eq.s32.totalorder %v390, 2
        %vm499 = vcmp.eq.s32.totalorder %v391, 2
        %vm500 = vcmp.eq.s32.totalorder %v392, 2
        %vm501 = vcmp.eq.s32.totalorder %v393, 2
        %vm502 = vcmp.eq.s32.totalorder %v394, 2
        %vm503 = vcmp.eq.s32.totalorder %v395, 2
        %vm504 = vcmp.eq.s32.totalorder %v396, 2
        %vm505 = vmand %vm397, %vm497
        %vm506 = vmand %vm398, %vm498
        %vm507 = vmand %vm399, %vm499
        %vm508 = vmand %vm400, %vm500
        %v509 = vsel %vm497, 1, 0
        %v510 = vsel %vm498, 1, 0
        %v511 = vsel %vm499, 1, 0
        %v512 = vsel %vm500, 1, 0
        %v513 = vadd.s32 %v509, %v510
        %v514 = vadd.s32 %v511, %v512
        %v515 = vsel %vm501, 1, 0
        %v516 = vsel %vm502, 1, 0
        %v517 = vsel %vm503, 1, 0
        %v518 = vsel %vm504, 1, 0
        %v519 = vadd.s32 %v515, %v516
        %v520 = vadd.s32 %v517, %v518
        %v521 = vsel %vm505, 1, 0
        %v522 = vsel %vm506, 1, 0
        %v523 = vsel %vm507, 1, 0
        %v524 = vsel %vm508, 1, 0
        %v525 = vadd.s32 %v521, %v522
        %v526 = vadd.s32 %v523, %v524
        %v527 = vld [vmem:[%s355 + $0x10] sm:$0xff]
        %v528 = vld [vmem:[%s355 + $0x30] sm:$0xff]
        %v529 = vadd.s32 %v527, %v513
        %v530 = vadd.s32 %v528, %v514
        %531 = vst [vmem:[%s355 + $0x10] sm:$0xff] %v529
        %532 = vst [vmem:[%s355 + $0x30] sm:$0xff] %v530
        %v533 = vld [vmem:[%s360 + $0x10] sm:$0xff]
        %v534 = vld [vmem:[%s360 + $0x30] sm:$0xff]
        %v535 = vadd.s32 %v533, %v519
        %v536 = vadd.s32 %v534, %v520
        %537 = vst [vmem:[%s360 + $0x10] sm:$0xff] %v535
        %538 = vst [vmem:[%s360 + $0x30] sm:$0xff] %v536
        %v539 = vld [vmem:[%s350 + $0x10] sm:$0xff]
        %v540 = vld [vmem:[%s350 + $0x30] sm:$0xff]
        %v541 = vadd.s32 %v539, %v525
        %v542 = vadd.s32 %v540, %v526
        %543 = vst [vmem:[%s350 + $0x10] sm:$0xff] %v541
        %544 = vst [vmem:[%s350 + $0x30] sm:$0xff] %v542
        %vm545 = vcmp.eq.s32.totalorder %v389, 3
        %vm546 = vcmp.eq.s32.totalorder %v390, 3
        %vm547 = vcmp.eq.s32.totalorder %v391, 3
        %vm548 = vcmp.eq.s32.totalorder %v392, 3
        %vm549 = vcmp.eq.s32.totalorder %v393, 3
        %vm550 = vcmp.eq.s32.totalorder %v394, 3
        %vm551 = vcmp.eq.s32.totalorder %v395, 3
        %vm552 = vcmp.eq.s32.totalorder %v396, 3
        %vm553 = vmand %vm397, %vm545
        %vm554 = vmand %vm398, %vm546
        %vm555 = vmand %vm399, %vm547
        %vm556 = vmand %vm400, %vm548
        %v557 = vsel %vm545, 1, 0
        %v558 = vsel %vm546, 1, 0
        %v559 = vsel %vm547, 1, 0
        %v560 = vsel %vm548, 1, 0
        %v561 = vadd.s32 %v557, %v558
        %v562 = vadd.s32 %v559, %v560
        %v563 = vsel %vm549, 1, 0
        %v564 = vsel %vm550, 1, 0
        %v565 = vsel %vm551, 1, 0
        %v566 = vsel %vm552, 1, 0
        %v567 = vadd.s32 %v563, %v564
        %v568 = vadd.s32 %v565, %v566
        %v569 = vsel %vm553, 1, 0
        %v570 = vsel %vm554, 1, 0
        %v571 = vsel %vm555, 1, 0
        %v572 = vsel %vm556, 1, 0
        %v573 = vadd.s32 %v569, %v570
        %v574 = vadd.s32 %v571, %v572
        %v575 = vld [vmem:[%s355 + $0x18] sm:$0xff]
        %v576 = vld [vmem:[%s355 + $0x38] sm:$0xff]
        %v577 = vadd.s32 %v575, %v561
        %v578 = vadd.s32 %v576, %v562
        %579 = vst [vmem:[%s355 + $0x18] sm:$0xff] %v577
        %580 = vst [vmem:[%s355 + $0x38] sm:$0xff] %v578
        %v581 = vld [vmem:[%s360 + $0x18] sm:$0xff]
        %v582 = vld [vmem:[%s360 + $0x38] sm:$0xff]
        %v583 = vadd.s32 %v581, %v567
        %v584 = vadd.s32 %v582, %v568
        %585 = vst [vmem:[%s360 + $0x18] sm:$0xff] %v583
        %586 = vst [vmem:[%s360 + $0x38] sm:$0xff] %v584
        %v587 = vld [vmem:[%s350 + $0x18] sm:$0xff]
        %v588 = vld [vmem:[%s350 + $0x38] sm:$0xff]
        %v589 = vadd.s32 %v587, %v573
        %v590 = vadd.s32 %v588, %v574
        %591 = vst [vmem:[%s350 + $0x18] sm:$0xff] %v589
        %592 = vst [vmem:[%s350 + $0x38] sm:$0xff] %v590
        %p593 = scmp.lt.s32.totalorder %s20, 1
        %s594 = scalar_select %p593, %s20, 1
        %s595 = smul.addr %s594, 8
        %s596 = smul.addr %s595, 8
        %s597 = scalar_lea.vmem %s2, %s596
        %p598 = scmp.lt.s32.totalorder %s20, 1
        %s599 = scalar_select %p598, %s20, 1
        %s600 = smul.addr %s599, 8
        %s601 = smul.addr %s600, 8
        %s602 = scalar_lea.vmem %s3, %s601
        %p603 = scmp.lt.s32.totalorder %s20, 1
        %s604 = scalar_select %p603, %s20, 1
        %s605 = smul.addr %s604, 8
        %s606 = smul.addr %s605, 8
        %s607 = scalar_lea.vmem %s4, %s606
        // Predicated region
        $region109: #{dice_loss.1} parent=95 // pred_check
          %p608 = pneg %p102
        $region110: #{dice_loss.1} parent=95 // pred_check_branch
          %610 = sbr.rel (%p608) target = $region112
        $region111: #{dice_loss.1} parent=95 // pred_region
          _
        $region112: #{dice_loss.1} parent=95 // pred_fallthru
          _
        // Predicated region
        $region113: #{dice_loss.1} parent=95 // pred_check
          %p611 = pneg %p128
        $region114: #{dice_loss.1} parent=95 // pred_check_branch
          %613 = sbr.rel (%p611) target = $region116
        $region115: #{dice_loss.1} parent=95 // pred_region
          _
        $region116: #{dice_loss.1} parent=95 // pred_fallthru
          _
        // Predicated region
        $region117: #{dice_loss.1} parent=95 // pred_check
          %p614 = pneg %p154
        $region118: #{dice_loss.1} parent=95 // pred_check_branch
          %616 = sbr.rel (%p614) target = $region120
        $region119: #{dice_loss.1} parent=95 // pred_region
          _
        $region120: #{dice_loss.1} parent=95 // pred_fallthru
          _
      $region96: #{dice_loss.1} parent=5 // pred_fallthru
        _
      %p617 = scmp.le.s32.totalorder 2, %s11
      // Predicated region
      $region121: #{dice_loss.1} parent=5 // pred_check
        %p618 = pneg %p617
      $region122: #{dice_loss.1} parent=5 // pred_check_branch
        %620 = sbr.rel (%p618) target = $region124
      $region123: #{dice_loss.1} parent=5 // pred_region
        %s621 = ssub.s32 %s11, 2
        // Predicated region
        $region125: #{dice_loss.1} parent=123 // pred_check
          %p622 = pneg %p108
        $region126: #{dice_loss.1} parent=123 // pred_check_branch
          %624 = sbr.rel (%p622) target = $region128
        $region127: #{dice_loss.1} parent=123 // pred_region
          %p625 = scmp.lt.s32.totalorder %s22, 1
          %s626 = scalar_select %p625, %s22, 1
          %s627 = smul.addr %s626, 8
          %s628 = smul.addr %s627, 8
          %s629 = scalar_lea.vmem %s2, %s628
        $region128: #{dice_loss.1} parent=123 // pred_fallthru
          _
        // Predicated region
        $region129: #{dice_loss.1} parent=123 // pred_check
          %p630 = pneg %p134
        $region130: #{dice_loss.1} parent=123 // pred_check_branch
          %632 = sbr.rel (%p630) target = $region132
        $region131: #{dice_loss.1} parent=123 // pred_region
          %p633 = scmp.lt.s32.totalorder %s22, 1
          %s634 = scalar_select %p633, %s22, 1
          %s635 = smul.addr %s634, 8
          %s636 = smul.addr %s635, 8
          %s637 = scalar_lea.vmem %s3, %s636
        $region132: #{dice_loss.1} parent=123 // pred_fallthru
          _
        // Predicated region
        $region133: #{dice_loss.1} parent=123 // pred_check
          %p638 = pneg %p160
        $region134: #{dice_loss.1} parent=123 // pred_check_branch
          %640 = sbr.rel (%p638) target = $region136
        $region135: #{dice_loss.1} parent=123 // pred_region
          %p641 = scmp.lt.s32.totalorder %s22, 1
          %s642 = scalar_select %p641, %s22, 1
          %s643 = smul.addr %s642, 8
          %s644 = smul.addr %s643, 8
          %s645 = scalar_lea.vmem %s4, %s644
        $region136: #{dice_loss.1} parent=123 // pred_fallthru
          _
      $region124: #{dice_loss.1} parent=5 // pred_fallthru
        _
    $region6: #{dice_loss.1} parent=1 // loop_footer
      %s15 = sadd.s32 1, %s11
    $region7: #{dice_loss.1} parent=1 // loop_footer_branch
      %10 = sbr.rel target = $region3
    $region8: #{dice_loss.1} parent=1 // loop_exit
      _

</llo_original>
